<compile_context>
chip_gen: v6e
topology: v6e:2x2x1
jax: 0.10.0
libtpu: 0.0.40
codegen_flags: <defaults>
</compile_context>

<pallas_src>
import jax
import jax.numpy as jnp
from jax.experimental import pallas as pl
from jax.experimental.pallas import tpu as pltpu


def _char_to_word_kernel(x_ref, pos_ref, mask_ref, gs_ref, ge_ref, w_ref, b_ref, out_ref):
    """One batch-block per grid step; batch folded into the row (M) dimension.

    x_ref   : (Bt*Lc, E)   bf16  gathered char embeddings (batch-major rows)
    pos_ref : (Bt*Lc, E)   bf16  positional embeddings tiled per batch item (invariant)
    mask_ref: (1, 1, Bt*Lc) f32  char mask, flattened to match x rows
    gs_ref  : (Bt*Lw, 1)   i32   per-word start row within the block
    ge_ref  : (Bt*Lw, 1)   i32   per-word end row (exclusive)
    w_ref   : (E, Dp)      bf16  projection weight, D padded to 128 lanes (invariant)
    b_ref   : (1, Dp)      f32   projection bias (invariant)
    out_ref : (Bt*Lw, Dp)  f32   lane-dense word embeddings
    """
    n_rows = gs_ref.shape[0]
    n_chars = x_ref.shape[0]

    # Char embedding + positional add (f32 math on bf16 inputs).
    x = x_ref[...].astype(jnp.float32) + pos_ref[...].astype(jnp.float32)     # (C, E)

    # Mask-aware mean-pooling matrix built on the VPU — zero HBM traffic for it.
    col = jax.lax.broadcasted_iota(jnp.int32, (n_rows, n_chars), 1)
    belongs = jnp.logical_and(col >= gs_ref[...], col < ge_ref[...]).astype(jnp.float32)
    weights = belongs * mask_ref[0]                                           # (R, C)
    counts = jnp.sum(weights, axis=-1, keepdims=True)                         # (R, 1)
    pool = weights * pl.reciprocal(jnp.maximum(counts, 1.0), approx=True)     # (R, C)

    # MXU: word pooling, then output projection — bf16 operands, f32 accumulation.
    pooled = jnp.dot(pool.astype(jnp.bfloat16), x.astype(jnp.bfloat16),
                     preferred_element_type=jnp.float32)                      # (R, E)
    out = jnp.dot(pooled.astype(jnp.bfloat16), w_ref[...],
                  preferred_element_type=jnp.float32) + b_ref[...]            # (R, Dp)
    out_ref[...] = out.astype(out_ref.dtype)


def _pick_batch_block(B, Lw, Lc):
    """Smallest divisor of B whose row blocks are 8-sublane aligned (keeps the grid
    as long as possible for megacore); fall back to full batch (full-dim blocks are
    always legal)."""
    for bt in range(1, B + 1):
        if B % bt == 0 and (bt * Lw) % 8 == 0 and (bt * Lc) % 8 == 0:
            return bt
    return B


def char_embedder_word(x_ids, mask, word_lens, params):
    """x_ids: (B, Lc) int32; mask: (B, Lc) float or None; word_lens: (B, Lw) int32."""
    emb = params["emb"]        # (V, E)
    pos = params["pos"]        # (1, max_pos, E)
    w = params["proj_w"]       # (E, D)
    b = params["proj_b"]       # (D,)

    B, Lc = x_ids.shape
    Lw = word_lens.shape[1]
    E = emb.shape[1]
    D = w.shape[1]
    Dp = 128 * pl.cdiv(D, 128)                       # lane-dense (128-multiple) output

    if mask is None:
        mask = jnp.ones((B, Lc), dtype=jnp.float32)
    mask = mask.astype(jnp.float32)

    Bt = _pick_batch_block(B, Lw, Lc)
    G = B // Bt

    # Embedding gather in XLA (no one-hot); bf16 halves gather/DMA bytes.
    x_flat = jnp.take(emb.astype(jnp.bfloat16), x_ids, axis=0).reshape(B * Lc, E)

    # Positional embeddings tiled once per batch-block item (grid-invariant input).
    pos_blk = jnp.tile(pos[0, :Lc, :].astype(jnp.bfloat16), (Bt, 1))          # (Bt*Lc, E)

    # Word segment bounds expressed as char-row offsets inside a batch block.
    ends = jnp.cumsum(word_lens, axis=1)
    starts = ends - word_lens
    local_off = (jnp.arange(B, dtype=jnp.int32) % Bt) * Lc
    gs = (starts.astype(jnp.int32) + local_off[:, None]).reshape(B * Lw, 1)
    ge = (ends.astype(jnp.int32) + local_off[:, None]).reshape(B * Lw, 1)

    mask_blk = mask.reshape(G, 1, Bt * Lc)

    w_p = jnp.pad(w, ((0, 0), (0, Dp - D))).astype(jnp.bfloat16)              # (E, Dp)
    b_p = jnp.pad(b, (0, Dp - D)).reshape(1, Dp).astype(jnp.float32)          # (1, Dp)

    out = pl.pallas_call(
        _char_to_word_kernel,
        out_shape=jax.ShapeDtypeStruct((B * Lw, Dp), jnp.float32),
        grid_spec=pltpu.PrefetchScalarGridSpec(
            num_scalar_prefetch=0,
            grid=(G,),
            in_specs=[
                pl.BlockSpec((Bt * Lc, E), lambda i: (i, 0)),        # char embeddings
                pl.BlockSpec((Bt * Lc, E), lambda i: (0, 0)),        # positional (invariant)
                pl.BlockSpec((1, 1, Bt * Lc), lambda i: (i, 0, 0)),  # char mask
                pl.BlockSpec((Bt * Lw, 1), lambda i: (i, 0)),        # word start rows
                pl.BlockSpec((Bt * Lw, 1), lambda i: (i, 0)),        # word end rows
                pl.BlockSpec((E, Dp), lambda i: (0, 0)),             # proj weight (invariant)
                pl.BlockSpec((1, Dp), lambda i: (0, 0)),             # proj bias (invariant)
            ],
            out_specs=pl.BlockSpec((Bt * Lw, Dp), lambda i: (i, 0)),
        ),
        compiler_params=pltpu.CompilerParams(dimension_semantics=("parallel",)),
    )(x_flat, pos_blk, mask_blk, gs, ge, w_p, b_p)

    embed = out.reshape(B, Lw, Dp)[:, :, :D]
    word_mask = (word_lens > 0).astype(jnp.float32)
    return embed, word_mask


def init_params(key, vocab_size, char_emb_dim, dim, max_pos_embs=2048):
    k1, k2, k3, k4 = jax.random.split(key, 4)
    return {
        "emb": jax.random.normal(k1, (vocab_size, char_emb_dim), jnp.float32),
        "pos": jax.random.normal(k2, (1, max_pos_embs, char_emb_dim), jnp.float32),
        "proj_w": jax.random.normal(k3, (char_emb_dim, dim), jnp.float32) * 0.02,
        "proj_b": jax.random.normal(k4, (dim,), jnp.float32) * 0.02,
    }


def _reference(x_ids, mask, word_lens, params):
    """Pure-JAX f32 reference of the same forward (for a tolerance check)."""
    emb, pos, w, b = params["emb"], params["pos"], params["proj_w"], params["proj_b"]
    B, Lc = x_ids.shape
    if mask is None:
        mask = jnp.ones((B, Lc), jnp.float32)
    mask = mask.astype(jnp.float32)
    x = emb[x_ids] + pos[0, :Lc][None]
    ends = jnp.cumsum(word_lens, axis=1)
    starts = ends - word_lens
    c = jnp.arange(Lc)
    belongs = ((c[None, None, :] >= starts[:, :, None]) &
               (c[None, None, :] < ends[:, :, None])).astype(jnp.float32)
    weights = belongs * mask[:, None, :]
    counts = jnp.maximum(weights.sum(-1, keepdims=True), 1.0)
    pooled = jnp.einsum("blc,bce->ble", weights / counts, x)
    return pooled @ w + b, (word_lens > 0).astype(jnp.float32)


if __name__ == "__main__":
    key = jax.random.PRNGKey(0)
    B, Lc, Lw = 4, 16, 4
    vocab_size, char_emb_dim, dim = 50, 32, 64

    kp, kx = jax.random.split(key)
    params = init_params(kp, vocab_size, char_emb_dim, dim, max_pos_embs=128)

    x_ids = jax.random.randint(kx, (B, Lc), 0, vocab_size, dtype=jnp.int32)
    mask = jnp.ones((B, Lc), dtype=jnp.float32).at[1, 12:].set(0.0)
    word_lens = jnp.array([[4, 4, 4, 4],
                           [5, 3, 6, 2],
                           [16, 0, 0, 0],
                           [2, 2, 2, 2]], dtype=jnp.int32)

    embed, word_mask = jax.jit(char_embedder_word)(x_ids, mask, word_lens, params)
    embed = jax.block_until_ready(embed)
    word_mask = jax.block_until_ready(word_mask)

    ref_embed, ref_mask = _reference(x_ids, mask, word_lens, params)

    assert embed.shape == (B, Lw, dim)
    assert word_mask.shape == (B, Lw)
    assert bool(jnp.all(word_mask == ref_mask))
    max_err = float(jnp.max(jnp.abs(embed - ref_embed)))
    assert max_err < 3e-2, f"max abs err {max_err}"   # bf16-operand / approx-recip tolerance
    print("KERNEL_OK")
</pallas_src>

<mosaic_0001>
module attributes {stable_mosaic.version = 11 : i64} {
  func.func @_char_to_word_kernel(%arg0: i32, %arg1: memref<32x32xbf16, #tpu.memory_space<vmem>>, %arg2: memref<32x32xbf16, #tpu.memory_space<vmem>>, %arg3: memref<1x1x32xf32, #tpu.memory_space<vmem>>, %arg4: memref<8x1xi32, #tpu.memory_space<vmem>>, %arg5: memref<8x1xi32, #tpu.memory_space<vmem>>, %arg6: memref<32x128xbf16, #tpu.memory_space<vmem>>, %arg7: memref<1x128xf32, #tpu.memory_space<vmem>>, %arg8: memref<8x128xf32, #tpu.memory_space<vmem>>) attributes {dimension_semantics = [#tpu.dimension_semantics<parallel>], iteration_bounds = array<i64: 2>, scalar_prefetch = 0 : i64, scratch_operands = 0 : i64, tpu.core_type = #tpu.core_type<tc>, window_params = [{transform_indices = @transform_0, window_bounds = array<i64: 32, 32>}, {pipeline_mode = #tpu.pipeline_mode<synchronous>, transform_indices = @transform_1, window_bounds = array<i64: 32, 32>}, {transform_indices = @transform_2, window_bounds = array<i64: 1, 1, 32>}, {transform_indices = @transform_3, window_bounds = array<i64: 8, 1>}, {transform_indices = @transform_4, window_bounds = array<i64: 8, 1>}, {pipeline_mode = #tpu.pipeline_mode<synchronous>, transform_indices = @transform_5, window_bounds = array<i64: 32, 128>}, {pipeline_mode = #tpu.pipeline_mode<synchronous>, transform_indices = @transform_6, window_bounds = array<i64: 1, 128>}, {transform_indices = @transform_7, window_bounds = array<i64: 8, 128>}]} {
    %c0 = arith.constant 0 : index
    %c0_0 = arith.constant 0 : index
    %0 = vector.load %arg1[%c0, %c0_0] : memref<32x32xbf16, #tpu.memory_space<vmem>>, vector<32x32xbf16>
    %1 = arith.extf %0 : vector<32x32xbf16> to vector<32x32xf32>
    %c0_1 = arith.constant 0 : index
    %c0_2 = arith.constant 0 : index
    %2 = vector.load %arg2[%c0_1, %c0_2] : memref<32x32xbf16, #tpu.memory_space<vmem>>, vector<32x32xbf16>
    %3 = arith.extf %2 : vector<32x32xbf16> to vector<32x32xf32>
    %4 = arith.addf %1, %3 : vector<32x32xf32>
    %5 = tpu.iota {dimensions = array<i32: 1>} : vector<8x32xi32>
    %c0_3 = arith.constant 0 : index
    %c0_4 = arith.constant 0 : index
    %6 = vector.load %arg4[%c0_3, %c0_4] : memref<8x1xi32, #tpu.memory_space<vmem>>, vector<8x1xi32>
    %7 = vector.broadcast %6 : vector<8x1xi32> to vector<8x32xi32>
    %8 = arith.cmpi sge, %5, %7 : vector<8x32xi32>
    %c0_5 = arith.constant 0 : index
    %c0_6 = arith.constant 0 : index
    %9 = vector.load %arg5[%c0_5, %c0_6] : memref<8x1xi32, #tpu.memory_space<vmem>>, vector<8x1xi32>
    %10 = vector.broadcast %9 : vector<8x1xi32> to vector<8x32xi32>
    %11 = arith.cmpi slt, %5, %10 : vector<8x32xi32>
    %12 = arith.andi %8, %11 : vector<8x32xi1>
    %13 = arith.extui %12 : vector<8x32xi1> to vector<8x32xi32>
    %14 = arith.sitofp %13 : vector<8x32xi32> to vector<8x32xf32>
    %c0_7 = arith.constant 0 : index
    %c0_8 = arith.constant 0 : index
    %c0_9 = arith.constant 0 : index
    %15 = vector.load %arg3[%c0_7, %c0_8, %c0_9] : memref<1x1x32xf32, #tpu.memory_space<vmem>>, vector<1x1x32xf32>
    %16 = vector.shape_cast %15 : vector<1x1x32xf32> to vector<1x32xf32>
    %17 = vector.broadcast %16 : vector<1x32xf32> to vector<8x32xf32>
    %18 = arith.mulf %14, %17 : vector<8x32xf32>
    %cst = arith.constant dense<0.000000e+00> : vector<8xf32>
    %19 = vector.multi_reduction <add>, %18, %cst [1] : vector<8x32xf32> to vector<8xf32>
    %20 = vector.shape_cast %19 : vector<8xf32> to vector<8x1xf32>
    %cst_10 = arith.constant 1.000000e+00 : f32
    %21 = vector.broadcast %cst_10 : f32 to vector<8x1xf32>
    %22 = arith.maximumf %20, %21 : vector<8x1xf32>
    %23 = tpu.reciprocal %22 {approx = true} : vector<8x1xf32> -> vector<8x1xf32>
    %24 = vector.broadcast %23 : vector<8x1xf32> to vector<8x32xf32>
    %25 = arith.mulf %18, %24 : vector<8x32xf32>
    %26 = arith.truncf %25 : vector<8x32xf32> to vector<8x32xbf16>
    %27 = arith.truncf %4 : vector<32x32xf32> to vector<32x32xbf16>
    %cst_11 = arith.constant dense<0.000000e+00> : vector<8x32xf32>
    %28 = tpu.matmul %26, %27, %cst_11 {dimension_numbers = #tpu.dot_dimension_numbers<[1], [0], [0], [1], [0, 0, 1, 1], [], []>} : vector<8x32xbf16>, vector<32x32xbf16>, vector<8x32xf32> -> vector<8x32xf32>
    %29 = arith.truncf %28 : vector<8x32xf32> to vector<8x32xbf16>
    %c0_12 = arith.constant 0 : index
    %c0_13 = arith.constant 0 : index
    %30 = vector.load %arg6[%c0_12, %c0_13] : memref<32x128xbf16, #tpu.memory_space<vmem>>, vector<32x128xbf16>
    %cst_14 = arith.constant dense<0.000000e+00> : vector<8x128xf32>
    %31 = tpu.matmul %29, %30, %cst_14 {dimension_numbers = #tpu.dot_dimension_numbers<[1], [0], [0], [1], [0, 0, 1, 1], [], []>} : vector<8x32xbf16>, vector<32x128xbf16>, vector<8x128xf32> -> vector<8x128xf32>
    %c0_15 = arith.constant 0 : index
    %c0_16 = arith.constant 0 : index
    %32 = vector.load %arg7[%c0_15, %c0_16] : memref<1x128xf32, #tpu.memory_space<vmem>>, vector<1x128xf32>
    %33 = vector.broadcast %32 : vector<1x128xf32> to vector<8x128xf32>
    %34 = arith.addf %31, %33 : vector<8x128xf32>
    %c0_17 = arith.constant 0 : index
    %c0_18 = arith.constant 0 : index
    %35 = vector.load %arg8[%c0_17, %c0_18] : memref<8x128xf32, #tpu.memory_space<vmem>>, vector<8x128xf32>
    tpu.vector_store %arg8[%c0_17, %c0_18], %34 {strides = array<i32>} : memref<8x128xf32, #tpu.memory_space<vmem>>, vector<8x128xf32>,
    return
  }
  func.func @transform_0(%arg0: i32) -> (i32, i32) {
    %c0_i32 = arith.constant 0 : i32
    %c0_i32_0 = arith.constant 0 : i32
    return %arg0, %c0_i32 : i32, i32
  }
  func.func @transform_1(%arg0: i32) -> (i32, i32) {
    %c0_i32 = arith.constant 0 : i32
    %c0_i32_0 = arith.constant 0 : i32
    %c0_i32_1 = arith.constant 0 : i32
    return %c0_i32, %c0_i32_0 : i32, i32
  }
  func.func @transform_2(%arg0: i32) -> (i32, i32, i32) {
    %c0_i32 = arith.constant 0 : i32
    %c0_i32_0 = arith.constant 0 : i32
    %c0_i32_1 = arith.constant 0 : i32
    return %arg0, %c0_i32, %c0_i32_0 : i32, i32, i32
  }
  func.func @transform_3(%arg0: i32) -> (i32, i32) {
    %c0_i32 = arith.constant 0 : i32
    %c0_i32_0 = arith.constant 0 : i32
    return %arg0, %c0_i32 : i32, i32
  }
  func.func @transform_4(%arg0: i32) -> (i32, i32) {
    %c0_i32 = arith.constant 0 : i32
    %c0_i32_0 = arith.constant 0 : i32
    return %arg0, %c0_i32 : i32, i32
  }
  func.func @transform_5(%arg0: i32) -> (i32, i32) {
    %c0_i32 = arith.constant 0 : i32
    %c0_i32_0 = arith.constant 0 : i32
    %c0_i32_1 = arith.constant 0 : i32
    return %c0_i32, %c0_i32_0 : i32, i32
  }
  func.func @transform_6(%arg0: i32) -> (i32, i32) {
    %c0_i32 = arith.constant 0 : i32
    %c0_i32_0 = arith.constant 0 : i32
    %c0_i32_1 = arith.constant 0 : i32
    return %c0_i32, %c0_i32_0 : i32, i32
  }
  func.func @transform_7(%arg0: i32) -> (i32, i32) {
    %c0_i32 = arith.constant 0 : i32
    %c0_i32_0 = arith.constant 0 : i32
    return %arg0, %c0_i32 : i32, i32
  }
}

</mosaic_0001>

<llo_original>
// kernel: char_embedder_word.1
$region0: #{char_embedder_word.1}
  #allocation0 [shape = 'u32[]', space=smem, size = 0x4, offset = 0x4, fixed_abs, tag = 'smem constant byte address 0x4 - core index']
  #allocation1 [shape = 'u32[144,128]{1,0:T(1,128)}', space=vmem, size = 0x12000, scoped, tag = 'internal scratch']
  %s0 = inlined_call_operand.vmem [shape: bf16[64,32], index: 0, kind: input, shape index: {}]
  %s1 = inlined_call_operand.vmem [shape: bf16[32,32], index: 1, kind: input, shape index: {}]
  %s2 = inlined_call_operand.vmem [shape: f32[2,1,32], index: 2, kind: input, shape index: {}]
  %s3 = inlined_call_operand.vmem [shape: s32[16,1], index: 3, kind: input, shape index: {}]
  %s4 = inlined_call_operand.vmem [shape: s32[16,1], index: 4, kind: input, shape index: {}]
  %s5 = inlined_call_operand.vmem [shape: bf16[32,128], index: 5, kind: input, shape index: {}]
  %s6 = inlined_call_operand.vmem [shape: f32[1,128], index: 6, kind: input, shape index: {}]
  %s7 = inlined_call_operand.hbm [shape: f32[16,128], index: 7, kind: output, shape index: {}]
  %s8 = sld [smem:[#allocation0]]
  $region61: #{char_embedder_word.1} parent=0
    _
  %s10 = ssub.s32 1, %s8
  %s11 = scalar_select 0, %s10, %s8
  $region1: #{char_embedder_word.1} parent=0
    #allocation2 [shape = 'u8[8192]{0}', space=vmem, size = 0x2000, scoped, tag = 'output window, operand 0']
    #allocation3 [shape = 's32[2]{0}', space=sflag, size = 0x8, scoped, tag = 'scoped memory for char_embedder_word.1']
    %12 = vsyncpa [#allocation3], 0
    %s13 = scalar_lea.sflag [#allocation3], 1
    %14 = vsyncpa %s13, 0
    loop: start=0, step=1, limit=4
    $region2: #{char_embedder_word.1} parent=1 // loop_pre_header
      _
    $region3: #{char_embedder_word.1} parent=1 // loop_header
      %s16 = sphi 0, %s20
      %p17 = scmp.ge.s32.totalorder %s16, 4
      %s26 = sphi 0, %s28
      %s29 = sphi 0, %s26
      %s30 = sphi 0, %s29
      %s46 = sphi 0, %s30
      %s50 = sphi 0, %s50
      %s52 = sphi 0, %s50
      %s53 = sphi 0, %s52
      %s67 = sphi 0, %s53
      %s73 = sphi 0, %s75
      %s76 = sphi 0, %s73
      %s77 = sphi 0, %s76
      %s93 = sphi 0, %s77
      %s99 = sphi 0, %s101
      %s102 = sphi 0, %s99
      %s103 = sphi 0, %s102
      %s119 = sphi 0, %s103
      %s125 = sphi 0, %s127
      %s128 = sphi 0, %s125
      %s129 = sphi 0, %s128
      %s145 = sphi 0, %s129
      %s149 = sphi 0, %s149
      %s151 = sphi 0, %s149
      %s152 = sphi 0, %s151
      %s166 = sphi 0, %s152
      %s170 = sphi 0, %s170
      %s172 = sphi 0, %s170
      %s173 = sphi 0, %s172
      %s187 = sphi 0, %s173
      %s193 = sphi 0, %s195
      %s196 = sphi 0, %s193
      %s197 = sphi 0, %s196
      %s213 = sphi 0, %s197
    $region4: #{char_embedder_word.1} parent=1 // loop_header_branch
      %19 = sbr.rel (%p17) target = $region8
    $region5: #{char_embedder_word.1} parent=1 // loop_body
      %s21 = ssub.s32 %s16, 1
      %s22 = ssub.s32 %s16, 2
      %s23 = sadd.s32 %s16, 1
      %s24 = ssub.s32 %s16, %s23
      %p25 = scmp.eq.s32.totalorder %s24, 0
      %s27 = sadd.s32 %s26, 1
      %s28 = scalar_select %p25, %s26, %s27
      %p31 = pneg %p25
      %p32 = scmp.eq.s32.totalorder %s16, 1
      %p33 = por %p31, %p32
      %p34 = scmp.ne.s32.totalorder %s26, %s29
      %p35 = scmp.eq.s32.totalorder %s16, 0
      %p36 = por %p34, %p35
      %p37 = scmp.ne.s32.totalorder %s26, %s29
      %p38 = scmp.eq.s32.totalorder %s21, 1
      %p39 = por %p37, %p38
      %p40 = scmp.ne.s32.totalorder %s29, %s30
      %p41 = scmp.eq.s32.totalorder %s21, 0
      %p42 = por %p40, %p41
      %p43 = scmp.ne.s32.totalorder %s29, %s30
      %p44 = scmp.eq.s32.totalorder %s22, 1
      %p45 = por %p43, %p44
      %p47 = scmp.ne.s32.totalorder %s30, %s46
      %p48 = scmp.eq.s32.totalorder %s22, 0
      %p49 = por %p47, %p48
      %s51 = sadd.s32 %s50, 1
      %p54 = scmp.eq.s32.totalorder %s16, 1
      %p55 = scmp.ne.s32.totalorder %s50, %s52
      %p56 = scmp.eq.s32.totalorder %s16, 0
      %p57 = por %p55, %p56
      %p58 = scmp.ne.s32.totalorder %s50, %s52
      %p59 = scmp.eq.s32.totalorder %s21, 1
      %p60 = por %p58, %p59
      %p61 = scmp.ne.s32.totalorder %s52, %s53
      %p62 = scmp.eq.s32.totalorder %s21, 0
      %p63 = por %p61, %p62
      %p64 = scmp.ne.s32.totalorder %s52, %s53
      %p65 = scmp.eq.s32.totalorder %s22, 1
      %p66 = por %p64, %p65
      %p68 = scmp.ne.s32.totalorder %s53, %s67
      %p69 = scmp.eq.s32.totalorder %s22, 0
      %p70 = por %p68, %p69
      %s71 = ssub.s32 %s16, %s23
      %p72 = scmp.eq.s32.totalorder %s71, 0
      %s74 = sadd.s32 %s73, 1
      %s75 = scalar_select %p72, %s73, %s74
      %p78 = pneg %p72
      %p79 = scmp.eq.s32.totalorder %s16, 1
      %p80 = por %p78, %p79
      %p81 = scmp.ne.s32.totalorder %s73, %s76
      %p82 = scmp.eq.s32.totalorder %s16, 0
      %p83 = por %p81, %p82
      %p84 = scmp.ne.s32.totalorder %s73, %s76
      %p85 = scmp.eq.s32.totalorder %s21, 1
      %p86 = por %p84, %p85
      %p87 = scmp.ne.s32.totalorder %s76, %s77
      %p88 = scmp.eq.s32.totalorder %s21, 0
      %p89 = por %p87, %p88
      %p90 = scmp.ne.s32.totalorder %s76, %s77
      %p91 = scmp.eq.s32.totalorder %s22, 1
      %p92 = por %p90, %p91
      %p94 = scmp.ne.s32.totalorder %s77, %s93
      %p95 = scmp.eq.s32.totalorder %s22, 0
      %p96 = por %p94, %p95
      %s97 = ssub.s32 %s16, %s23
      %p98 = scmp.eq.s32.totalorder %s97, 0
      %s100 = sadd.s32 %s99, 1
      %s101 = scalar_select %p98, %s99, %s100
      %p104 = pneg %p98
      %p105 = scmp.eq.s32.totalorder %s16, 1
      %p106 = por %p104, %p105
      %p107 = scmp.ne.s32.totalorder %s99, %s102
      %p108 = scmp.eq.s32.totalorder %s16, 0
      %p109 = por %p107, %p108
      %p110 = scmp.ne.s32.totalorder %s99, %s102
      %p111 = scmp.eq.s32.totalorder %s21, 1
      %p112 = por %p110, %p111
      %p113 = scmp.ne.s32.totalorder %s102, %s103
      %p114 = scmp.eq.s32.totalorder %s21, 0
      %p115 = por %p113, %p114
      %p116 = scmp.ne.s32.totalorder %s102, %s103
      %p117 = scmp.eq.s32.totalorder %s22, 1
      %p118 = por %p116, %p117
      %p120 = scmp.ne.s32.totalorder %s103, %s119
      %p121 = scmp.eq.s32.totalorder %s22, 0
      %p122 = por %p120, %p121
      %s123 = ssub.s32 %s16, %s23
      %p124 = scmp.eq.s32.totalorder %s123, 0
      %s126 = sadd.s32 %s125, 1
      %s127 = scalar_select %p124, %s125, %s126
      %p130 = pneg %p124
      %p131 = scmp.eq.s32.totalorder %s16, 1
      %p132 = por %p130, %p131
      %p133 = scmp.ne.s32.totalorder %s125, %s128
      %p134 = scmp.eq.s32.totalorder %s16, 0
      %p135 = por %p133, %p134
      %p136 = scmp.ne.s32.totalorder %s125, %s128
      %p137 = scmp.eq.s32.totalorder %s21, 1
      %p138 = por %p136, %p137
      %p139 = scmp.ne.s32.totalorder %s128, %s129
      %p140 = scmp.eq.s32.totalorder %s21, 0
      %p141 = por %p139, %p140
      %p142 = scmp.ne.s32.totalorder %s128, %s129
      %p143 = scmp.eq.s32.totalorder %s22, 1
      %p144 = por %p142, %p143
      %p146 = scmp.ne.s32.totalorder %s129, %s145
      %p147 = scmp.eq.s32.totalorder %s22, 0
      %p148 = por %p146, %p147
      %s150 = sadd.s32 %s149, 1
      %p153 = scmp.eq.s32.totalorder %s16, 1
      %p154 = scmp.ne.s32.totalorder %s149, %s151
      %p155 = scmp.eq.s32.totalorder %s16, 0
      %p156 = por %p154, %p155
      %p157 = scmp.ne.s32.totalorder %s149, %s151
      %p158 = scmp.eq.s32.totalorder %s21, 1
      %p159 = por %p157, %p158
      %p160 = scmp.ne.s32.totalorder %s151, %s152
      %p161 = scmp.eq.s32.totalorder %s21, 0
      %p162 = por %p160, %p161
      %p163 = scmp.ne.s32.totalorder %s151, %s152
      %p164 = scmp.eq.s32.totalorder %s22, 1
      %p165 = por %p163, %p164
      %p167 = scmp.ne.s32.totalorder %s152, %s166
      %p168 = scmp.eq.s32.totalorder %s22, 0
      %p169 = por %p167, %p168
      %s171 = sadd.s32 %s170, 1
      %p174 = scmp.eq.s32.totalorder %s16, 1
      %p175 = scmp.ne.s32.totalorder %s170, %s172
      %p176 = scmp.eq.s32.totalorder %s16, 0
      %p177 = por %p175, %p176
      %p178 = scmp.ne.s32.totalorder %s170, %s172
      %p179 = scmp.eq.s32.totalorder %s21, 1
      %p180 = por %p178, %p179
      %p181 = scmp.ne.s32.totalorder %s172, %s173
      %p182 = scmp.eq.s32.totalorder %s21, 0
      %p183 = por %p181, %p182
      %p184 = scmp.ne.s32.totalorder %s172, %s173
      %p185 = scmp.eq.s32.totalorder %s22, 1
      %p186 = por %p184, %p185
      %p188 = scmp.ne.s32.totalorder %s173, %s187
      %p189 = scmp.eq.s32.totalorder %s22, 0
      %p190 = por %p188, %p189
      %s191 = ssub.s32 %s16, %s23
      %p192 = scmp.eq.s32.totalorder %s191, 0
      %s194 = sadd.s32 %s193, 1
      %s195 = scalar_select %p192, %s193, %s194
      %p198 = pneg %p192
      %p199 = scmp.eq.s32.totalorder %s16, 1
      %p200 = por %p198, %p199
      %p201 = scmp.ne.s32.totalorder %s193, %s196
      %p202 = scmp.eq.s32.totalorder %s16, 0
      %p203 = por %p201, %p202
      %p204 = scmp.ne.s32.totalorder %s193, %s196
      %p205 = scmp.eq.s32.totalorder %s21, 1
      %p206 = por %p204, %p205
      %p207 = scmp.ne.s32.totalorder %s196, %s197
      %p208 = scmp.eq.s32.totalorder %s21, 0
      %p209 = por %p207, %p208
      %p210 = scmp.ne.s32.totalorder %s196, %s197
      %p211 = scmp.eq.s32.totalorder %s22, 1
      %p212 = por %p210, %p211
      %p214 = scmp.ne.s32.totalorder %s197, %s213
      %p215 = scmp.eq.s32.totalorder %s22, 0
      %p216 = por %p214, %p215
      %p217 = scmp.le.s32.totalorder 1, %s16
      %p218 = scmp.lt.s32.totalorder %s16, 3
      %p219 = pnand %p217, %p218
      %p220 = pneg %p219
      // Predicated region
      $region9: #{char_embedder_word.1} parent=5 // pred_check
        _
      $region10: #{char_embedder_word.1} parent=5 // pred_check_branch
        %222 = sbr.rel (%p219) target = $region12
      $region11: #{char_embedder_word.1} parent=5 // pred_region
        %s223 = ssub.s32 %s16, 1
        // Predicated region
        $region13: #{char_embedder_word.1} parent=11 // pred_check
          %p224 = pneg %p63
        $region14: #{char_embedder_word.1} parent=11 // pred_check_branch
          %226 = sbr.rel (%p224) target = $region16
        $region15: #{char_embedder_word.1} parent=11 // pred_region
          _
        $region16: #{char_embedder_word.1} parent=11 // pred_fallthru
          _
        // Predicated region
        $region17: #{char_embedder_word.1} parent=11 // pred_check
          %p227 = pneg %p162
        $region18: #{char_embedder_word.1} parent=11 // pred_check_branch
          %229 = sbr.rel (%p227) target = $region20
        $region19: #{char_embedder_word.1} parent=11 // pred_region
          _
        $region20: #{char_embedder_word.1} parent=11 // pred_fallthru
          _
        // Predicated region
        $region21: #{char_embedder_word.1} parent=11 // pred_check
          %p230 = pneg %p183
        $region22: #{char_embedder_word.1} parent=11 // pred_check_branch
          %232 = sbr.rel (%p230) target = $region24
        $region23: #{char_embedder_word.1} parent=11 // pred_region
          _
        $region24: #{char_embedder_word.1} parent=11 // pred_fallthru
          _
      $region12: #{char_embedder_word.1} parent=5 // pred_fallthru
        _
      %p233 = scmp.lt.s32.totalorder %s16, 2
      // Predicated region
      $region25: #{char_embedder_word.1} parent=5 // pred_check
        %p234 = pneg %p233
      $region26: #{char_embedder_word.1} parent=5 // pred_check_branch
        %236 = sbr.rel (%p234) target = $region28
      $region27: #{char_embedder_word.1} parent=5 // pred_region
        // Predicated region
        $region29: #{char_embedder_word.1} parent=27 // pred_check
          %p237 = pneg %p36
        $region30: #{char_embedder_word.1} parent=27 // pred_check_branch
          %239 = sbr.rel (%p237) target = $region32
        $region31: #{char_embedder_word.1} parent=27 // pred_region
          %s240 = smul.u32 4, %s16
          %p241 = scmp.lt.s32.totalorder %s240, 7
          %s242 = scalar_select %p241, %s240, 7
          %s243 = smul.addr %s242, 4
          %s244 = scalar_lea.vmem %s0, %s243
          %s245 = smul.u32 4, %s16
        $region32: #{char_embedder_word.1} parent=27 // pred_fallthru
          _
        // Predicated region
        $region33: #{char_embedder_word.1} parent=27 // pred_check
          %p246 = pneg %p83
        $region34: #{char_embedder_word.1} parent=27 // pred_check_branch
          %248 = sbr.rel (%p246) target = $region36
        $region35: #{char_embedder_word.1} parent=27 // pred_region
          %p249 = scmp.lt.s32.totalorder %s16, 1
          %s250 = scalar_select %p249, %s16, 1
          %s251 = scalar_lea.vmem %s2, %s250
        $region36: #{char_embedder_word.1} parent=27 // pred_fallthru
          _
        // Predicated region
        $region37: #{char_embedder_word.1} parent=27 // pred_check
          %p252 = pneg %p109
        $region38: #{char_embedder_word.1} parent=27 // pred_check_branch
          %254 = sbr.rel (%p252) target = $region40
        $region39: #{char_embedder_word.1} parent=27 // pred_region
          %p255 = scmp.lt.s32.totalorder %s16, 1
          %s256 = scalar_select %p255, %s16, 1
          %s257 = smul.addr %s256, 8
          %s258 = scalar_lea.vmem %s3, %s257
        $region40: #{char_embedder_word.1} parent=27 // pred_fallthru
          _
        // Predicated region
        $region41: #{char_embedder_word.1} parent=27 // pred_check
          %p259 = pneg %p135
        $region42: #{char_embedder_word.1} parent=27 // pred_check_branch
          %261 = sbr.rel (%p259) target = $region44
        $region43: #{char_embedder_word.1} parent=27 // pred_region
          %p262 = scmp.lt.s32.totalorder %s16, 1
          %s263 = scalar_select %p262, %s16, 1
          %s264 = smul.addr %s263, 8
          %s265 = scalar_lea.vmem %s4, %s264
        $region44: #{char_embedder_word.1} parent=27 // pred_fallthru
          _
      $region28: #{char_embedder_word.1} parent=5 // pred_fallthru
        _
      %p266 = scmp.le.s32.totalorder 1, %s16
      %p267 = scmp.lt.s32.totalorder %s16, 3
      %p268 = pnand %p266, %p267
      %p269 = pneg %p268
      // Predicated region
      $region45: #{char_embedder_word.1} parent=5 // pred_check
        _
      $region46: #{char_embedder_word.1} parent=5 // pred_check_branch
        %271 = sbr.rel (%p268) target = $region48
      $region47: #{char_embedder_word.1} parent=5 // pred_region
        %s272 = ssub.s32 %s16, 1
        %s273 = smul.u32 4, %s21
        %p274 = scmp.lt.s32.totalorder %s273, 7
        %s275 = scalar_select %p274, %s273, 7
        %s276 = smul.addr %s275, 4
        %s277 = scalar_lea.vmem %s0, %s276
        %p278 = pneg %p42
        %p279 = pneg %p39
        %p280 = pneg %p63
        %p281 = pneg %p60
        %p282 = scmp.lt.s32.totalorder %s21, 1
        %s283 = scalar_select %p282, %s21, 1
        %s284 = scalar_lea.vmem %s2, %s283
        %p285 = pneg %p89
        %p286 = pneg %p86
        %p287 = scmp.lt.s32.totalorder %s21, 1
        %s288 = scalar_select %p287, %s21, 1
        %s289 = smul.addr %s288, 8
        %s290 = scalar_lea.vmem %s3, %s289
        %p291 = pneg %p115
        %p292 = pneg %p112
        %p293 = scmp.lt.s32.totalorder %s21, 1
        %s294 = scalar_select %p293, %s21, 1
        %s295 = smul.addr %s294, 8
        %s296 = scalar_lea.vmem %s4, %s295
        %p297 = pneg %p141
        %p298 = pneg %p138
        %p299 = pneg %p162
        %p300 = pneg %p159
        %p301 = pneg %p183
        %p302 = pneg %p180
        %p303 = pneg %p209
        %p304 = pneg %p206
        %s305 = sand.u32 %s196, 1
        %s306 = scalar_lea.sflag [#allocation3], %s305
        %s307 = sand.u32 %s196, 1
        %s308 = smul.addr %s307, 8
        %s309 = scalar_lea.vmem [#allocation2], %s308
        %s310 = smul.u32 4, %s21
        %p311 = scmp.lt.s32.totalorder %s310, 7
        %s312 = scalar_select %p311, %s310, 7
        %s313 = smul.addr %s312, 4
        %s314 = scalar_lea.vmem %s0, %s313
        %s315 = smul.u32 4, %s21
        %p316 = scmp.lt.s32.totalorder %s21, 1
        %s317 = scalar_select %p316, %s21, 1
        %s318 = scalar_lea.vmem %s2, %s317
        %p319 = scmp.lt.s32.totalorder %s21, 1
        %s320 = scalar_select %p319, %s21, 1
        %s321 = smul.addr %s320, 8
        %s322 = scalar_lea.vmem %s3, %s321
        %p323 = scmp.lt.s32.totalorder %s21, 1
        %s324 = scalar_select %p323, %s21, 1
        %s325 = smul.addr %s324, 8
        %s326 = scalar_lea.vmem %s4, %s325
        %v328 = vld [vmem:[%s314] sm:$0xf]
        %v329 = vld [vmem:[%s314 + $0x4] sm:$0xf]
        %v330 = vld [vmem:[%s314 + $0x8] sm:$0xf]
        %v331 = vld [vmem:[%s314 + $0xc] sm:$0xf]
        %v332 = vunpack.c.l.bf16 %v328
        %v333 = vunpack.c.l.bf16 %v329
        %v334 = vunpack.c.l.bf16 %v330
        %v335 = vunpack.c.l.bf16 %v331
        %v336 = vld [vmem:[%s1] sm:$0xf]
        %v337 = vld [vmem:[%s1 + $0x4] sm:$0xf]
        %v338 = vld [vmem:[%s1 + $0x8] sm:$0xf]
        %v339 = vld [vmem:[%s1 + $0xc] sm:$0xf]
        %v340 = vunpack.c.l.bf16 %v336
        %v341 = vunpack.c.l.bf16 %v337
        %v342 = vunpack.c.l.bf16 %v338
        %v343 = vunpack.c.l.bf16 %v339
        %v344 = vadd.f32 %v332, %v340
        %v345 = vadd.f32 %v333, %v341
        %v346 = vadd.f32 %v334, %v342
        %v347 = vadd.f32 %v335, %v343
        %v348 = vlaneseq
        %v349 = vand.u32 %v348, 127
        %v350 = vld [vmem:[%s322] sm:$0xff]
        %351 = vset.pattern.permute.xlu0 0
        %352 = vperm.xlu0 %351, %v350
        %v353 = vpop.permute.xlu0 %352
        %vm354 = vcmp.ge.s32.totalorder %v349, %v353
        %v355 = vld [vmem:[%s326] sm:$0xff]
        %356 = vset.pattern.permute.xlu0 0
        %357 = vperm.xlu0 %356, %v355
        %v358 = vpop.permute.xlu0 %357
        %vm359 = vcmp.lt.s32.totalorder %v349, %v358
        %vm360 = vmand %vm354, %vm359
        %v361 = vsel %vm360, 1, 0
        %v362 = vcvt.s32.f32 %v361
        %v363 = vld [vmem:[%s318] sm:$0x1]
        %v365 = vlaneseq
        %v366 = vshrl.u32 %v365, 7
        %v367 = vsub.s32 0, %v366
        %v368 = vrot.slane %v363, %v367
        %v370 = vmul.f32 %v362, %v368
        %vm371 = vcmask 261120
        %v372 = vsel %vm371, %v370, 0.0
        %373 = vadd.xlane.f32.xlu0 %v372
        %v374 = vpop.xlane.xlu0 %373
        %v375 = vmax.f32 %v374, 1.0
        %v376 = vrcp.pop %v375
        %v377 = vmul.f32 %v370, %v376
        %v378 = vpack.c.bf16 %v377, %v377
        %v379 = vpack.c.bf16 %v345, %v344
        %v380 = vpack.c.bf16 %v347, %v346
        %v382 = vsel %vm371, %v378, 0
        %384 = vmatprep.subr.bf16.mxu0 0
        %385 = vmatpush1.bf16.msra.mxu0 0
        %386 = vmatprep.subr.bf16.mxu0 0
        %387 = vmatpush1.bf16.msra.mxu0 0
        %388 = vmatprep.subr.bf16.mxu0 0
        %389 = vmatpush1.bf16.msra.mxu0 0
        %390 = vmatprep.subr.bf16.mxu0 0
        %391 = vmatpush1.bf16.msra.mxu0 0
        %392 = vmatprep.subr.bf16.mxu0 0
        %393 = vmatpush1.bf16.msra.mxu0 0
        %394 = vmatprep.subr.bf16.mxu0 0
        %395 = vmatpush1.bf16.msra.mxu0 0
        %396 = vmatprep.subr.bf16.mxu0 0
        %397 = vmatpush1.bf16.msra.mxu0 %v380
        %398 = vmatprep.subr.bf16.mxu0 0
        %399 = vmatpush1.bf16.msra.mxu0 %v379
        %400 = vmatprep.subr.bf16.mxu0 0
        %401 = vmatpush2.bf16.msra.mxu0 0
        %402 = vmatprep.subr.bf16.mxu0 0
        %403 = vmatpush2.bf16.msra.mxu0 0
        %404 = vmatprep.subr.bf16.mxu0 0
        %405 = vmatpush2.bf16.msra.mxu0 0
        %406 = vmatprep.subr.bf16.mxu0 0
        %407 = vmatpush2.bf16.msra.mxu0 0
        %408 = vmatprep.subr.bf16.mxu0 0
        %409 = vmatpush2.bf16.msra.mxu0 0
        %410 = vmatprep.subr.bf16.mxu0 0
        %411 = vmatpush2.bf16.msra.mxu0 0
        %412 = vmatprep.subr.bf16.mxu0 0
        %413 = vmatpush2.bf16.msra.mxu0 0
        %414 = vmatprep.subr.bf16.mxu0 0
        %415 = vmatpush2.bf16.msra.mxu0 0
        %416 = vmatprep.mubr.bf16.mxu0 0
        %417 = vmatmul.mubr.bf16.gmra.mxu0 %v382
        %v418 = vpop.f32.mrf.mxu0
        %v419 = vadd.f32 0.0, %v418
        %v420 = vpop.f32.mrf.mxu0
        %v421 = vpop.f32.mrf.mxu0
        %v422 = vpop.f32.mrf.mxu0
        %423 = vdwg.mxu0
        %v424 = vpack.c.bf16 %v419, %v419
        %v425 = vld [vmem:[%s5] sm:$0xf]
        %v426 = vld [vmem:[%s5 + $0x4] sm:$0xf]
        %v427 = vld [vmem:[%s5 + $0x8] sm:$0xf]
        %v428 = vld [vmem:[%s5 + $0xc] sm:$0xf]
        %v429 = vld [vmem:[%s6] sm:$0x1]
        %v431 = vlaneseq
        %v432 = vshrl.u32 %v431, 7
        %v433 = vsub.s32 0, %v432
        %v434 = vrot.slane %v429, %v433
        %v440 = vunpack.c.l.b16 %v425
        %v441 = vunpack.c.l.b16 %v426
        %v442 = vunpack.c.l.b16 %v427
        %v443 = vunpack.c.l.b16 %v428
        %v444 = vpack.c.b16 %v441, %v440
        %v445 = vpack.c.b16 %v443, %v442
        %v449 = vsel %vm371, %v424, 0
        %451 = vmatprep.subr.bf16.mxu0 0
        %452 = vmatpush1.bf16.msra.mxu0 0
        %453 = vmatprep.subr.bf16.mxu0 0
        %454 = vmatpush1.bf16.msra.mxu0 0
        %455 = vmatprep.subr.bf16.mxu0 0
        %456 = vmatpush1.bf16.msra.mxu0 0
        %457 = vmatprep.subr.bf16.mxu0 0
        %458 = vmatpush1.bf16.msra.mxu0 0
        %459 = vmatprep.subr.bf16.mxu0 0
        %460 = vmatpush1.bf16.msra.mxu0 0
        %461 = vmatprep.subr.bf16.mxu0 0
        %462 = vmatpush1.bf16.msra.mxu0 0
        %463 = vmatprep.subr.bf16.mxu0 0
        %464 = vmatpush1.bf16.msra.mxu0 %v445
        %465 = vmatprep.subr.bf16.mxu0 0
        %466 = vmatpush1.bf16.msra.mxu0 %v444
        %467 = vmatprep.subr.bf16.mxu0 0
        %468 = vmatpush2.bf16.msra.mxu0 0
        %469 = vmatprep.subr.bf16.mxu0 0
        %470 = vmatpush2.bf16.msra.mxu0 0
        %471 = vmatprep.subr.bf16.mxu0 0
        %472 = vmatpush2.bf16.msra.mxu0 0
        %473 = vmatprep.subr.bf16.mxu0 0
        %474 = vmatpush2.bf16.msra.mxu0 0
        %475 = vmatprep.subr.bf16.mxu0 0
        %476 = vmatpush2.bf16.msra.mxu0 0
        %477 = vmatprep.subr.bf16.mxu0 0
        %478 = vmatpush2.bf16.msra.mxu0 0
        %479 = vmatprep.subr.bf16.mxu0 0
        %480 = vmatpush2.bf16.msra.mxu0 0
        %481 = vmatprep.subr.bf16.mxu0 0
        %482 = vmatpush2.bf16.msra.mxu0 0
        %483 = vmatprep.mubr.bf16.mxu0 0
        %484 = vmatmul.mubr.bf16.gmra.mxu0 %v449
        %v485 = vpop.f32.mrf.mxu0
        %v486 = vadd.f32 %v434, %v485
        %v487 = vpop.f32.mrf.mxu0
        %v488 = vpop.f32.mrf.mxu0
        %v489 = vpop.f32.mrf.mxu0
        %490 = vdwg.mxu0
        %491 = vst [vmem:[%s309] sm:$0xff] %v486
        %s492 = sand.u32 %s196, 1
        %s493 = scalar_lea.sflag [#allocation3], %s492
        %s494 = sand.u32 %s196, 1
        %s495 = smul.addr %s494, 8
        %s496 = scalar_lea.vmem [#allocation2], %s495
        // Predicated region
        $region49: #{char_embedder_word.1} parent=47 // pred_check
          %p497 = pneg %p206
        $region50: #{char_embedder_word.1} parent=47 // pred_check_branch
          %499 = sbr.rel (%p497) target = $region52
        $region51: #{char_embedder_word.1} parent=47 // pred_region
          %s501 = ssub.s32 128, 128
          %502 = vsyncadd %s493, %s501
          %s503 = smul.addr %s21, 128
          %s504 = scalar_lea.hbm %s7, %s503
          %s506 = sshll.u32 %s496, 4
          %s507 = int_to_ptr.vmem [resolvable:$true] %s506
          %509 = dma.vmem_to_hbm [thread:$0]  %s507, 128, %s504, %s493
        $region52: #{char_embedder_word.1} parent=47 // pred_fallthru
          _
      $region48: #{char_embedder_word.1} parent=5 // pred_fallthru
        _
      %p510 = scmp.le.s32.totalorder 2, %s16
      // Predicated region
      $region53: #{char_embedder_word.1} parent=5 // pred_check
        %p511 = pneg %p510
      $region54: #{char_embedder_word.1} parent=5 // pred_check_branch
        %513 = sbr.rel (%p511) target = $region56
      $region55: #{char_embedder_word.1} parent=5 // pred_region
        %s514 = ssub.s32 %s16, 2
        // Predicated region
        $region57: #{char_embedder_word.1} parent=55 // pred_check
          %p515 = pneg %p212
        $region58: #{char_embedder_word.1} parent=55 // pred_check_branch
          %517 = sbr.rel (%p515) target = $region60
        $region59: #{char_embedder_word.1} parent=55 // pred_region
          %s518 = sand.u32 %s197, 1
          %s519 = scalar_lea.sflag [#allocation3], %s518
          %s520 = sand.u32 %s197, 1
          %s521 = smul.addr %s520, 8
          %s522 = scalar_lea.vmem [#allocation2], %s521
          %523 = dma.done %s519, 128
        $region60: #{char_embedder_word.1} parent=55 // pred_fallthru
          _
      $region56: #{char_embedder_word.1} parent=5 // pred_fallthru
        _
    $region6: #{char_embedder_word.1} parent=1 // loop_footer
      %s20 = sadd.s32 1, %s16
    $region7: #{char_embedder_word.1} parent=1 // loop_footer_branch
      %15 = sbr.rel target = $region3
    $region8: #{char_embedder_word.1} parent=1 // loop_exit
      _
    %524 = vsyncpa [#allocation3], 1
    %s525 = scalar_lea.sflag [#allocation3], 1
    %526 = vsyncpa %s525, 1

</llo_original>
